<compile_context>
chip_gen: v7x
topology: tpu7x:2x2x1
jax: 0.10.0
libtpu: 0.0.40
codegen_flags: <defaults>
</compile_context>

<pallas_src>
import functools

import jax
import jax.numpy as jnp
from jax.experimental import pallas as pl
from jax.experimental.pallas import tpu as pltpu


# ------------------------------ gate math ------------------------------------

def _gate_update(gates, c_prev, n_prev, m_prev, H, approx_recip):
    """sLSTM cell math from pre-activations (stabilized, overflow-safe form).

    Algebraically identical to the PyTorch sequence
        i = exp(ai); f = exp(af)
        m = max(log(f) + m_prev, log(i))
        i_hat = exp(log(i) - m); f_hat = exp(log(f) + m_prev - m)
    but without the exp/log round trips.
    """
    az = gates[:, 0 * H:1 * H]
    ai = gates[:, 1 * H:2 * H]
    af = gates[:, 2 * H:3 * H]
    ao = gates[:, 3 * H:4 * H]

    z = jnp.tanh(az)
    o = jax.nn.sigmoid(ao)

    m = jnp.maximum(af + m_prev, ai)
    i_hat = jnp.exp(ai - m)
    f_hat = jnp.exp(af + m_prev - m)

    c = f_hat * c_prev + i_hat * z
    n = f_hat * n_prev + i_hat

    r = pl.reciprocal(n, approx=approx_recip)
    if approx_recip:
        # One Newton step (VPU-only): removes the approx-rcp error that would
        # otherwise compound through the recurrence via h_prev.
        r = r * (2.0 - n * r)
    h = o * c * r
    return h, c, n, m


# ------------------- hoisted input projection: gx = x @ W + b ----------------

def _proj_kernel(x_ref, w_ref, b_ref, gx_ref):
    gx = jnp.dot(x_ref[...], w_ref[...], preferred_element_type=jnp.float32)
    gx_ref[...] = (gx + b_ref[...]).astype(gx_ref.dtype)


def _input_projection(xs, W, b, *, mxu_dtype=jnp.float32, max_rows=1024):
    """gx[t, b_, :] = xs[t, b_, :] @ W + b, computed as one big batched matmul."""
    T, B, IN = xs.shape
    G = W.shape[1]
    TB = T * B
    x2 = xs.reshape(TB, IN).astype(mxu_dtype)

    row_blk = TB
    if TB > max_rows:
        for cand in (1024, 512, 256, 128, 64, 32, 16, 8):
            if TB % cand == 0:
                row_blk = cand
                break

    gx = pl.pallas_call(
        _proj_kernel,
        grid=(TB // row_blk,),
        in_specs=[
            pl.BlockSpec((row_blk, IN), lambda i: (i, 0)),   # rows of [x_t]
            pl.BlockSpec((IN, G), lambda i: (0, 0)),         # W resident
            pl.BlockSpec((1, G), lambda i: (0, 0)),          # bias resident
        ],
        out_specs=pl.BlockSpec((row_blk, G), lambda i: (i, 0)),
        out_shape=jax.ShapeDtypeStruct((TB, G), jnp.float32),
        compiler_params=pltpu.CompilerParams(
            dimension_semantics=("parallel",)),
    )(x2, W.astype(mxu_dtype), b.astype(jnp.float32))
    return gx.reshape(T, B, G)


# -------------------- recurrence: T steps, chunked over the grid --------------

def _slstm_rec_kernel(gx_ref, s0_ref, r_ref, out_ref, *,
                      hidden_size, t_chunk, approx_recip):
    H = hidden_size

    @pl.when(pl.program_id(0) == 0)
    def _():
        out_ref[...] = s0_ref[...]          # init packed state [h|c|n|m]

    R_mat = r_ref[...]                      # hoisted: loaded once per chunk

    h0 = out_ref[:, 0 * H:1 * H]
    c0 = out_ref[:, 1 * H:2 * H]
    n0 = out_ref[:, 2 * H:3 * H]
    m0 = out_ref[:, 3 * H:4 * H]

    def step(i, carry):
        h_prev, c_prev, n_prev, m_prev = carry
        gates = gx_ref[i] + jnp.dot(h_prev.astype(R_mat.dtype), R_mat,
                                    preferred_element_type=jnp.float32)
        return _gate_update(gates, c_prev, n_prev, m_prev, H, approx_recip)

    h, c, n, m = jax.lax.fori_loop(0, t_chunk, step, (h0, c0, n0, m0),
                                   unroll=True)

    # Sliced stores into the resident output slab (no concat, no extra copy).
    out_ref[:, 0 * H:1 * H] = h
    out_ref[:, 1 * H:2 * H] = c
    out_ref[:, 2 * H:3 * H] = n
    out_ref[:, 3 * H:4 * H] = m


def slstm_sequence(xs, h0, c0, n0, m0, W, R, b, *, t_chunk=4,
                   approx_recip=True, mxu_dtype=jnp.float32):
    """Run T recurrent sLSTM steps: hoisted projection + chunked recurrence.

    xs: (T, B, input_size); W: (IN, 4H); R: (H, 4H); b: (1, 4H).
    Gate order along the 4H axis is [z, i, f, o].  Returns final (h, c, n, m).
    """
    T, B, IN = xs.shape
    H = h0.shape[1]
    assert W.shape == (IN, 4 * H)
    assert R.shape == (H, 4 * H)
    assert b.shape == (1, 4 * H)

    # Non-recurrent part: one big matmul (separate 'parallel' Pallas kernel).
    gx = _input_projection(xs, W, b, mxu_dtype=mxu_dtype)       # (T, B, 4H) f32

    # Chunk the time axis (amortize per-grid-step pipeline overhead).
    t_chunk = max(1, min(t_chunk, T))
    while T % t_chunk:
        t_chunk -= 1
    n_chunks = T // t_chunk

    s0 = jnp.concatenate([h0, c0, n0, m0], axis=1).astype(jnp.float32)

    kernel = functools.partial(_slstm_rec_kernel, hidden_size=H,
                               t_chunk=t_chunk, approx_recip=approx_recip)

    out = pl.pallas_call(
        kernel,
        grid=(n_chunks,),
        in_specs=[
            pl.BlockSpec((t_chunk, B, 4 * H), lambda t: (t, 0, 0)),  # gx chunk
            pl.BlockSpec((B, 4 * H), lambda t: (0, 0)),              # s0 (read @ t==0)
            pl.BlockSpec((H, 4 * H), lambda t: (0, 0)),              # R resident
        ],
        out_specs=pl.BlockSpec((B, 4 * H), lambda t: (0, 0)),        # state resident
        out_shape=jax.ShapeDtypeStruct((B, 4 * H), jnp.float32),
        compiler_params=pltpu.CompilerParams(
            dimension_semantics=("arbitrary",)),     # recurrence: sequential
    )(gx, s0, R.astype(mxu_dtype))

    return (out[:, 0:H], out[:, H:2 * H],
            out[:, 2 * H:3 * H], out[:, 3 * H:4 * H])


# ----------------------------- single time step ------------------------------

def _slstm_step_kernel(x_ref, s_ref, w_ref, r_ref, b_ref, out_ref, *,
                       hidden_size, approx_recip):
    H = hidden_size
    h_prev = s_ref[:, 0 * H:1 * H]
    c_prev = s_ref[:, 1 * H:2 * H]
    n_prev = s_ref[:, 2 * H:3 * H]
    m_prev = s_ref[:, 3 * H:4 * H]

    # Two dots straight from resident buffers (no lane-axis concat).
    gates = (jnp.dot(x_ref[...], w_ref[...], preferred_element_type=jnp.float32)
             + jnp.dot(h_prev.astype(r_ref.dtype), r_ref[...],
                       preferred_element_type=jnp.float32)
             + b_ref[...])

    h, c, n, m = _gate_update(gates, c_prev, n_prev, m_prev, H, approx_recip)

    out_ref[:, 0 * H:1 * H] = h
    out_ref[:, 1 * H:2 * H] = c
    out_ref[:, 2 * H:3 * H] = n
    out_ref[:, 3 * H:4 * H] = m


def slstm_step_packed(x, state, W, R, b, *, approx_recip=True,
                      mxu_dtype=jnp.float32):
    """One sLSTM step with a packed (B, 4H) = [h|c|n|m] state slab.

    The output aliases the state slab (in-place recurrent update); treat the
    passed-in `state` as donated.
    """
    B, IN = x.shape
    H = state.shape[1] // 4
    assert W.shape == (IN, 4 * H) and R.shape == (H, 4 * H) and b.shape == (1, 4 * H)

    kernel = functools.partial(_slstm_step_kernel, hidden_size=H,
                               approx_recip=approx_recip)
    return pl.pallas_call(
        kernel,
        grid=(),
        in_specs=[
            pl.BlockSpec((B, IN), lambda: (0, 0)),
            pl.BlockSpec((B, 4 * H), lambda: (0, 0)),
            pl.BlockSpec((IN, 4 * H), lambda: (0, 0)),
            pl.BlockSpec((H, 4 * H), lambda: (0, 0)),
            pl.BlockSpec((1, 4 * H), lambda: (0, 0)),
        ],
        out_specs=pl.BlockSpec((B, 4 * H), lambda: (0, 0)),
        out_shape=jax.ShapeDtypeStruct((B, 4 * H), jnp.float32),
        input_output_aliases={1: 0},    # genuine in-place state update
    )(x.astype(mxu_dtype), state.astype(jnp.float32),
      W.astype(mxu_dtype), R.astype(mxu_dtype), b.astype(jnp.float32))


def slstm_block(x, h_prev, c_prev, n_prev, m_prev, W, R, b, *,
                approx_recip=True, mxu_dtype=jnp.float32):
    """PyTorch-shaped API: (x, h, c, n, m) -> (h, c, n, m).

    NOTE: this packs/unpacks the state in XLA on every call; for repeated
    stepping prefer slstm_step_packed (in-place slab) or slstm_sequence.
    """
    H = h_prev.shape[1]
    state = jnp.concatenate([h_prev, c_prev, n_prev, m_prev],
                            axis=1).astype(jnp.float32)
    out = slstm_step_packed(x, state, W, R, b, approx_recip=approx_recip,
                            mxu_dtype=mxu_dtype)
    return (out[:, 0:H], out[:, H:2 * H],
            out[:, 2 * H:3 * H], out[:, 3 * H:4 * H])


# --------------------------------- reference ---------------------------------

def _reference_step(x, h_prev, c_prev, n_prev, m_prev, W, R, b):
    """Pure-JAX transcription of the PyTorch forward (eval mode)."""
    H = h_prev.shape[1]
    g = x @ W + h_prev @ R + b
    az, ai, af, ao = (g[:, k * H:(k + 1) * H] for k in range(4))
    z = jnp.tanh(az)
    i = jnp.exp(ai)
    f = jnp.exp(af)
    o = jax.nn.sigmoid(ao)
    m = jnp.maximum(jnp.log(f) + m_prev, jnp.log(i))
    i_hat = jnp.exp(jnp.log(i) - m)
    f_hat = jnp.exp(jnp.log(f) + m_prev - m)
    c = f_hat * c_prev + i_hat * z
    n = f_hat * n_prev + i_hat
    h = o * c / n
    return h, c, n, m


if __name__ == "__main__":
    B = 8      # batch
    IN = 32    # input_size
    H = 32     # hidden_size
    T = 8      # sequence length for the fused-recurrence demo

    key = jax.random.PRNGKey(0)
    keys = jax.random.split(key, 16)

    # nn.Linear-style init scale ~ 1/sqrt(fan_in); weights packed transposed.
    def init(k, shape, fan_in):
        lim = 1.0 / jnp.sqrt(fan_in)
        return jax.random.uniform(k, shape, jnp.float32, -lim, lim)

    Wz = init(keys[0], (IN, H), IN); Wi = init(keys[1], (IN, H), IN)
    Wf = init(keys[2], (IN, H), IN); Wo = init(keys[3], (IN, H), IN)
    Rz = init(keys[4], (H, H), H);   Ri = init(keys[5], (H, H), H)
    Rf = init(keys[6], (H, H), H);   Ro = init(keys[7], (H, H), H)
    bWz = init(keys[8], (H,), IN);   bWi = init(keys[9], (H,), IN)
    bWf = init(keys[10], (H,), IN);  bWo = init(keys[11], (H,), IN)
    bRz = init(keys[12], (H,), H);   bRi = init(keys[13], (H,), H)
    bRf = init(keys[14], (H,), H);   bRo = init(keys[15], (H,), H)

    W = jnp.concatenate([Wz, Wi, Wf, Wo], axis=1)            # (IN, 4H)
    R = jnp.concatenate([Rz, Ri, Rf, Ro], axis=1)            # (H, 4H)
    b = jnp.concatenate([bWz + bRz, bWi + bRi, bWf + bRf, bWo + bRo])[None, :]

    kx, kh, kc, kn, km, ks = jax.random.split(jax.random.PRNGKey(1), 6)
    x = jax.random.normal(kx, (B, IN), jnp.float32)
    h_prev = jax.random.normal(kh, (B, H), jnp.float32)
    c_prev = jax.random.normal(kc, (B, H), jnp.float32)
    n_prev = jnp.abs(jax.random.normal(kn, (B, H), jnp.float32)) + 0.5
    m_prev = 0.1 * jax.random.normal(km, (B, H), jnp.float32)
    xs = jax.random.normal(ks, (T, B, IN), jnp.float32)

    # ----- single step (PyTorch-shaped API) -----
    step_fn = jax.jit(slstm_block)
    h, c, n, m = step_fn(x, h_prev, c_prev, n_prev, m_prev, W, R, b)
    jax.block_until_ready((h, c, n, m))

    h_r, c_r, n_r, m_r = _reference_step(x, h_prev, c_prev, n_prev, m_prev, W, R, b)
    assert jnp.allclose(c, c_r, rtol=1e-5, atol=1e-5), "c mismatch"
    assert jnp.allclose(n, n_r, rtol=1e-5, atol=1e-5), "n mismatch"
    assert jnp.allclose(m, m_r, rtol=1e-5, atol=1e-5), "m mismatch"
    assert jnp.allclose(h, h_r, rtol=1e-4, atol=1e-4), "h mismatch"

    # ----- single step (packed in-place state API) -----
    state = jnp.concatenate([h_prev, c_prev, n_prev, m_prev], axis=1)
    packed_fn = jax.jit(slstm_step_packed)
    new_state = packed_fn(x, state, W, R, b)
    jax.block_until_ready(new_state)
    assert jnp.allclose(new_state[:, 0:H], h_r, rtol=1e-4, atol=1e-4), "packed h mismatch"
    assert jnp.allclose(new_state[:, H:2 * H], c_r, rtol=1e-5, atol=1e-5), "packed c mismatch"

    # ----- T steps: hoisted projection + chunked recurrence in one pallas_call -----
    seq_fn = jax.jit(functools.partial(slstm_sequence, t_chunk=4))
    hT, cT, nT, mT = seq_fn(xs, h_prev, c_prev, n_prev, m_prev, W, R, b)
    jax.block_until_ready((hT, cT, nT, mT))

    hr, cr, nr, mr = h_prev, c_prev, n_prev, m_prev
    for t in range(T):
        hr, cr, nr, mr = _reference_step(xs[t], hr, cr, nr, mr, W, R, b)
    for got, want, name in ((hT, hr, "h"), (cT, cr, "c"), (nT, nr, "n"), (mT, mr, "m")):
        assert jnp.allclose(got, want, rtol=5e-3, atol=5e-3), f"sequence {name} mismatch"

    print("KERNEL_OK")
</pallas_src>

<mosaic_0001>
module attributes {stable_mosaic.version = 11 : i64} {
  func.func @_slstm_step_kernel(%arg0: memref<8x32xf32, #tpu.memory_space<vmem>>, %arg1: memref<8x128xf32, #tpu.memory_space<vmem>>, %arg2: memref<32x128xf32, #tpu.memory_space<vmem>>, %arg3: memref<32x128xf32, #tpu.memory_space<vmem>>, %arg4: memref<1x128xf32, #tpu.memory_space<vmem>>, %arg5: memref<8x128xf32, #tpu.memory_space<vmem>>) attributes {dimension_semantics = [], scalar_prefetch = 0 : i64, scratch_operands = 0 : i64, tpu.core_type = #tpu.core_type<tc>} {
    %c0 = arith.constant 0 : index
    %c0_0 = arith.constant 0 : index
    %0 = vector.load %arg1[%c0, %c0_0] : memref<8x128xf32, #tpu.memory_space<vmem>>, vector<8x32xf32>
    %c0_1 = arith.constant 0 : index
    %c32 = arith.constant 32 : index
    %1 = vector.load %arg1[%c0_1, %c32] : memref<8x128xf32, #tpu.memory_space<vmem>>, vector<8x32xf32>
    %c0_2 = arith.constant 0 : index
    %c64 = arith.constant 64 : index
    %2 = vector.load %arg1[%c0_2, %c64] : memref<8x128xf32, #tpu.memory_space<vmem>>, vector<8x32xf32>
    %c0_3 = arith.constant 0 : index
    %c96 = arith.constant 96 : index
    %3 = vector.load %arg1[%c0_3, %c96] : memref<8x128xf32, #tpu.memory_space<vmem>>, vector<8x32xf32>
    %c0_4 = arith.constant 0 : index
    %c0_5 = arith.constant 0 : index
    %4 = vector.load %arg0[%c0_4, %c0_5] : memref<8x32xf32, #tpu.memory_space<vmem>>, vector<8x32xf32>
    %c0_6 = arith.constant 0 : index
    %c0_7 = arith.constant 0 : index
    %5 = vector.load %arg2[%c0_6, %c0_7] : memref<32x128xf32, #tpu.memory_space<vmem>>, vector<32x128xf32>
    %cst = arith.constant dense<0.000000e+00> : vector<8x128xf32>
    %6 = tpu.matmul %4, %5, %cst {dimension_numbers = #tpu.dot_dimension_numbers<[1], [0], [0], [1], [0, 0, 1, 1], [], []>} : vector<8x32xf32>, vector<32x128xf32>, vector<8x128xf32> -> vector<8x128xf32>
    %c0_8 = arith.constant 0 : index
    %c0_9 = arith.constant 0 : index
    %7 = vector.load %arg3[%c0_8, %c0_9] : memref<32x128xf32, #tpu.memory_space<vmem>>, vector<32x128xf32>
    %cst_10 = arith.constant dense<0.000000e+00> : vector<8x128xf32>
    %8 = tpu.matmul %0, %7, %cst_10 {dimension_numbers = #tpu.dot_dimension_numbers<[1], [0], [0], [1], [0, 0, 1, 1], [], []>} : vector<8x32xf32>, vector<32x128xf32>, vector<8x128xf32> -> vector<8x128xf32>
    %9 = arith.addf %6, %8 : vector<8x128xf32>
    %c0_11 = arith.constant 0 : index
    %c0_12 = arith.constant 0 : index
    %10 = vector.load %arg4[%c0_11, %c0_12] : memref<1x128xf32, #tpu.memory_space<vmem>>, vector<1x128xf32>
    %11 = vector.broadcast %10 : vector<1x128xf32> to vector<8x128xf32>
    %12 = arith.addf %9, %11 : vector<8x128xf32>
    %13 = vector.extract_strided_slice %12 {offsets = [0, 0], sizes = [8, 32], strides = [1, 1]} : vector<8x128xf32> to vector<8x32xf32>
    %14 = vector.extract_strided_slice %12 {offsets = [0, 32], sizes = [8, 32], strides = [1, 1]} : vector<8x128xf32> to vector<8x32xf32>
    %15 = vector.extract_strided_slice %12 {offsets = [0, 64], sizes = [8, 32], strides = [1, 1]} : vector<8x128xf32> to vector<8x32xf32>
    %16 = vector.extract_strided_slice %12 {offsets = [0, 96], sizes = [8, 32], strides = [1, 1]} : vector<8x128xf32> to vector<8x32xf32>
    %17 = math.tanh %13 : vector<8x32xf32>
    %18 = arith.negf %16 : vector<8x32xf32>
    %19 = math.exp %18 : vector<8x32xf32>
    %cst_13 = arith.constant 1.000000e+00 : f32
    %20 = vector.broadcast %cst_13 : f32 to vector<8x32xf32>
    %21 = arith.addf %20, %19 : vector<8x32xf32>
    %22 = arith.divf %20, %21 : vector<8x32xf32>
    %23 = arith.addf %15, %3 : vector<8x32xf32>
    %24 = arith.maximumf %23, %14 : vector<8x32xf32>
    %25 = arith.subf %14, %24 : vector<8x32xf32>
    %26 = math.exp %25 : vector<8x32xf32>
    %27 = arith.addf %15, %3 : vector<8x32xf32>
    %28 = arith.subf %27, %24 : vector<8x32xf32>
    %29 = math.exp %28 : vector<8x32xf32>
    %30 = arith.mulf %29, %1 : vector<8x32xf32>
    %31 = arith.mulf %26, %17 : vector<8x32xf32>
    %32 = arith.addf %30, %31 : vector<8x32xf32>
    %33 = arith.mulf %29, %2 : vector<8x32xf32>
    %34 = arith.addf %33, %26 : vector<8x32xf32>
    %35 = tpu.reciprocal %34 {approx = true} : vector<8x32xf32> -> vector<8x32xf32>
    %36 = arith.mulf %34, %35 : vector<8x32xf32>
    %cst_14 = arith.constant 2.000000e+00 : f32
    %37 = vector.broadcast %cst_14 : f32 to vector<8x32xf32>
    %38 = arith.subf %37, %36 : vector<8x32xf32>
    %39 = arith.mulf %35, %38 : vector<8x32xf32>
    %40 = arith.mulf %22, %32 : vector<8x32xf32>
    %41 = arith.mulf %40, %39 : vector<8x32xf32>
    %c0_15 = arith.constant 0 : index
    %c0_16 = arith.constant 0 : index
    %42 = vector.load %arg5[%c0_15, %c0_16] : memref<8x128xf32, #tpu.memory_space<vmem>>, vector<8x32xf32>
    tpu.vector_store %arg5[%c0_15, %c0_16], %41 {strides = array<i32>} : memref<8x128xf32, #tpu.memory_space<vmem>>, vector<8x32xf32>,
    %c0_17 = arith.constant 0 : index
    %c32_18 = arith.constant 32 : index
    %43 = vector.load %arg5[%c0_17, %c32_18] : memref<8x128xf32, #tpu.memory_space<vmem>>, vector<8x32xf32>
    tpu.vector_store %arg5[%c0_17, %c32_18], %32 {strides = array<i32>} : memref<8x128xf32, #tpu.memory_space<vmem>>, vector<8x32xf32>,
    %c0_19 = arith.constant 0 : index
    %c64_20 = arith.constant 64 : index
    %44 = vector.load %arg5[%c0_19, %c64_20] : memref<8x128xf32, #tpu.memory_space<vmem>>, vector<8x32xf32>
    tpu.vector_store %arg5[%c0_19, %c64_20], %34 {strides = array<i32>} : memref<8x128xf32, #tpu.memory_space<vmem>>, vector<8x32xf32>,
    %c0_21 = arith.constant 0 : index
    %c96_22 = arith.constant 96 : index
    %45 = vector.load %arg5[%c0_21, %c96_22] : memref<8x128xf32, #tpu.memory_space<vmem>>, vector<8x32xf32>
    tpu.vector_store %arg5[%c0_21, %c96_22], %24 {strides = array<i32>} : memref<8x128xf32, #tpu.memory_space<vmem>>, vector<8x32xf32>,
    return
  }
}

</mosaic_0001>

<llo_original>
// kernel: slstm_block.1
$region0: #{slstm_block.1}
  #allocation0 [shape = 'u32[]', space=smem, size = 0x4, offset = 0x4, fixed_abs, tag = 'smem constant byte address 0x4 - core index']
  #allocation1 [shape = 'u32[144,128]{1,0:T(1,128)}', space=vmem, size = 0x12000, scoped, tag = 'internal scratch']
  %s0 = inlined_call_operand.vmem [shape: f32[8,32], index: 0, kind: input, shape index: {}]
  %s1 = inlined_call_operand.vmem [shape: f32[8,128], index: 1, kind: input, shape index: {}, may-alias: {1,5}]
  %s2 = inlined_call_operand.vmem [shape: f32[32,128], index: 2, kind: input, shape index: {}]
  %s3 = inlined_call_operand.hbm [shape: f32[32,128], index: 3, kind: input, shape index: {}]
  %s4 = inlined_call_operand.vmem [shape: f32[1,128], index: 4, kind: input, shape index: {}]
  %s5 = inlined_call_operand.vmem [shape: f32[8,128], index: 5, kind: output, shape index: {}, may-alias: {1,5}]
  %s6 = sld [smem:[#allocation0]]
  $region34: #{slstm_block.1} parent=0
    _
  %s8 = ssub.s32 1, %s6
  %s9 = scalar_select 0, %s8, %s6
  $region1: #{slstm_block.1} parent=0
    #allocation2 [shape = 'u8[16384]{0}', space=vmem, size = 0x4000, scoped, tag = 'input window, operand 3, single buffered']
    #allocation3 [shape = 's32[1]{0}', space=sflag, size = 0x4, scoped, tag = 'scoped memory for slstm_block.1']
    %10 = vsyncpa [#allocation3], 0
    // Predicated region
    $region2: #{slstm_block.1} parent=1 // pred_check
      _
    $region3: #{slstm_block.1} parent=1 // pred_check_branch
      %12 = sbr.rel (0) target = $region5
    $region4: #{slstm_block.1} parent=1 // pred_region
      _
    $region5: #{slstm_block.1} parent=1 // pred_fallthru
      _
    // Predicated region
    $region6: #{slstm_block.1} parent=1 // pred_check
      _
    $region7: #{slstm_block.1} parent=1 // pred_check_branch
      %14 = sbr.rel (0) target = $region9
    $region8: #{slstm_block.1} parent=1 // pred_region
      _
    $region9: #{slstm_block.1} parent=1 // pred_fallthru
      _
    // Predicated region
    $region10: #{slstm_block.1} parent=1 // pred_check
      _
    $region11: #{slstm_block.1} parent=1 // pred_check_branch
      %16 = sbr.rel (0) target = $region13
    $region12: #{slstm_block.1} parent=1 // pred_region
      _
    $region13: #{slstm_block.1} parent=1 // pred_fallthru
      _
    // Predicated region
    $region14: #{slstm_block.1} parent=1 // pred_check
      _
    $region15: #{slstm_block.1} parent=1 // pred_check_branch
      %18 = sbr.rel (0) target = $region17
    $region16: #{slstm_block.1} parent=1 // pred_region
      %s20 = ssub.s32 512, 512
      %21 = vsyncadd [#allocation3], %s20
      %s22 = sshll.u32 [#allocation2], 4
      %s23 = int_to_ptr.vmem [resolvable:$true] %s22
      %28 = dma.hbm_to_vmem [thread:$0]  %s3, 512, %s23, [#allocation3], 128, 128, 8
    $region17: #{slstm_block.1} parent=1 // pred_fallthru
      _
    // Predicated region
    $region18: #{slstm_block.1} parent=1 // pred_check
      _
    $region19: #{slstm_block.1} parent=1 // pred_check_branch
      %30 = sbr.rel (0) target = $region21
    $region20: #{slstm_block.1} parent=1 // pred_region
      _
    $region21: #{slstm_block.1} parent=1 // pred_fallthru
      _
    // Predicated region
    $region22: #{slstm_block.1} parent=1 // pred_check
      _
    $region23: #{slstm_block.1} parent=1 // pred_check_branch
      %32 = sbr.rel (0) target = $region25
    $region24: #{slstm_block.1} parent=1 // pred_region
      %33 = dma.done [#allocation3], 512
    $region25: #{slstm_block.1} parent=1 // pred_fallthru
      _
    %v34 = vld [vmem:[%s1] sm:$0xff]
    %v35 = vld [vmem:[%s0] sm:$0xff]
    %v36 = vld [vmem:[%s2] sm:$0xff]
    %v37 = vld [vmem:[%s2 + $0x8] sm:$0xff]
    %v38 = vld [vmem:[%s2 + $0x10] sm:$0xff]
    %v39 = vld [vmem:[%s2 + $0x18] sm:$0xff]
    %v40 = vld [vmem:[#allocation2] sm:$0xff]
    %v41 = vld [vmem:[#allocation2 + $0x8] sm:$0xff]
    %v42 = vld [vmem:[#allocation2 + $0x10] sm:$0xff]
    %v43 = vld [vmem:[#allocation2 + $0x18] sm:$0xff]
    %vm44 = vcmask 261120
    %v46 = vsel %vm44, %v34, 0
    %48 = vmatprep.subr.mxu0 0.0
    %49 = vmatpush1.msra.mxu0 %v40
    %50 = vmatprep.subr.mxu0 0.0
    %51 = vmatpush1.msra.mxu0 %v41
    %52 = vmatprep.subr.mxu0 0.0
    %53 = vmatpush1.msra.mxu0 %v42
    %54 = vmatprep.subr.mxu0 0.0
    %55 = vmatpush1.msra.mxu0 %v43
    %56 = vmatprep.subr.mxu0 0.0
    %57 = vmatpush1.msra.mxu0 0.0
    %58 = vmatprep.subr.mxu0 0.0
    %59 = vmatpush1.msra.mxu0 0.0
    %60 = vmatprep.subr.mxu0 0.0
    %61 = vmatpush1.msra.mxu0 0.0
    %62 = vmatprep.subr.mxu0 0.0
    %63 = vmatpush1.msra.mxu0 0.0
    %64 = vmatprep.subr.mxu0 0.0
    %65 = vmatpush1.msra.mxu0 0.0
    %66 = vmatprep.subr.mxu0 0.0
    %67 = vmatpush1.msra.mxu0 0.0
    %68 = vmatprep.subr.mxu0 0.0
    %69 = vmatpush1.msra.mxu0 0.0
    %70 = vmatprep.subr.mxu0 0.0
    %71 = vmatpush1.msra.mxu0 0.0
    %72 = vmatprep.subr.mxu0 0.0
    %73 = vmatpush1.msra.mxu0 0.0
    %74 = vmatprep.subr.mxu0 0.0
    %75 = vmatpush1.msra.mxu0 0.0
    %76 = vmatprep.subr.mxu0 0.0
    %77 = vmatpush1.msra.mxu0 0.0
    %78 = vmatprep.subr.mxu0 0.0
    %79 = vmatpush1.msra.mxu0 0.0
    %80 = vmatprep.subr.mxu0 0.0
    %81 = vmatpush1.msra.mxu0 0.0
    %82 = vmatprep.subr.mxu0 0.0
    %83 = vmatpush1.msra.mxu0 0.0
    %84 = vmatprep.subr.mxu0 0.0
    %85 = vmatpush1.msra.mxu0 0.0
    %86 = vmatprep.subr.mxu0 0.0
    %87 = vmatpush1.msra.mxu0 0.0
    %88 = vmatprep.subr.mxu0 0.0
    %89 = vmatpush1.msra.mxu0 0.0
    %90 = vmatprep.subr.mxu0 0.0
    %91 = vmatpush1.msra.mxu0 0.0
    %92 = vmatprep.subr.mxu0 0.0
    %93 = vmatpush1.msra.mxu0 0.0
    %94 = vmatprep.subr.mxu0 0.0
    %95 = vmatpush1.msra.mxu0 0.0
    %96 = vmatprep.subr.mxu0 0.0
    %97 = vmatpush1.msra.mxu0 0.0
    %98 = vmatprep.subr.mxu0 0.0
    %99 = vmatpush1.msra.mxu0 0.0
    %100 = vmatprep.subr.mxu0 0.0
    %101 = vmatpush1.msra.mxu0 0.0
    %102 = vmatprep.subr.mxu0 0.0
    %103 = vmatpush1.msra.mxu0 0.0
    %104 = vmatprep.subr.mxu0 0.0
    %105 = vmatpush1.msra.mxu0 0.0
    %106 = vmatprep.subr.mxu0 0.0
    %107 = vmatpush1.msra.mxu0 0.0
    %108 = vmatprep.subr.mxu0 0.0
    %109 = vmatpush1.msra.mxu0 0.0
    %110 = vmatprep.subr.mxu0 0.0
    %111 = vmatpush1.msra.mxu0 0.0
    %112 = vmatprep.mubr.f32.mxu0 0.0
    %113 = vmatmul.mubr.f32.gmra.mrb[0].mxu0 %v46
    %v114 = vpop.f32.mrb[0].mxu0
    %v115 = vadd.f32 0.0, %v114
    %v116 = vpop.f32.mrb[0].mxu0
    %117 = vdwg.mxu0
    %v119 = vsel %vm44, %v35, 0
    %121 = vmatprep.subr.mxu0 0.0
    %122 = vmatpush1.msra.mxu0 %v36
    %123 = vmatprep.subr.mxu0 0.0
    %124 = vmatpush1.msra.mxu0 %v37
    %125 = vmatprep.subr.mxu0 0.0
    %126 = vmatpush1.msra.mxu0 %v38
    %127 = vmatprep.subr.mxu0 0.0
    %128 = vmatpush1.msra.mxu0 %v39
    %129 = vmatprep.subr.mxu0 0.0
    %130 = vmatpush1.msra.mxu0 0.0
    %131 = vmatprep.subr.mxu0 0.0
    %132 = vmatpush1.msra.mxu0 0.0
    %133 = vmatprep.subr.mxu0 0.0
    %134 = vmatpush1.msra.mxu0 0.0
    %135 = vmatprep.subr.mxu0 0.0
    %136 = vmatpush1.msra.mxu0 0.0
    %137 = vmatprep.subr.mxu0 0.0
    %138 = vmatpush1.msra.mxu0 0.0
    %139 = vmatprep.subr.mxu0 0.0
    %140 = vmatpush1.msra.mxu0 0.0
    %141 = vmatprep.subr.mxu0 0.0
    %142 = vmatpush1.msra.mxu0 0.0
    %143 = vmatprep.subr.mxu0 0.0
    %144 = vmatpush1.msra.mxu0 0.0
    %145 = vmatprep.subr.mxu0 0.0
    %146 = vmatpush1.msra.mxu0 0.0
    %147 = vmatprep.subr.mxu0 0.0
    %148 = vmatpush1.msra.mxu0 0.0
    %149 = vmatprep.subr.mxu0 0.0
    %150 = vmatpush1.msra.mxu0 0.0
    %151 = vmatprep.subr.mxu0 0.0
    %152 = vmatpush1.msra.mxu0 0.0
    %153 = vmatprep.subr.mxu0 0.0
    %154 = vmatpush1.msra.mxu0 0.0
    %155 = vmatprep.subr.mxu0 0.0
    %156 = vmatpush1.msra.mxu0 0.0
    %157 = vmatprep.subr.mxu0 0.0
    %158 = vmatpush1.msra.mxu0 0.0
    %159 = vmatprep.subr.mxu0 0.0
    %160 = vmatpush1.msra.mxu0 0.0
    %161 = vmatprep.subr.mxu0 0.0
    %162 = vmatpush1.msra.mxu0 0.0
    %163 = vmatprep.subr.mxu0 0.0
    %164 = vmatpush1.msra.mxu0 0.0
    %165 = vmatprep.subr.mxu0 0.0
    %166 = vmatpush1.msra.mxu0 0.0
    %167 = vmatprep.subr.mxu0 0.0
    %168 = vmatpush1.msra.mxu0 0.0
    %169 = vmatprep.subr.mxu0 0.0
    %170 = vmatpush1.msra.mxu0 0.0
    %171 = vmatprep.subr.mxu0 0.0
    %172 = vmatpush1.msra.mxu0 0.0
    %173 = vmatprep.subr.mxu0 0.0
    %174 = vmatpush1.msra.mxu0 0.0
    %175 = vmatprep.subr.mxu0 0.0
    %176 = vmatpush1.msra.mxu0 0.0
    %177 = vmatprep.subr.mxu0 0.0
    %178 = vmatpush1.msra.mxu0 0.0
    %179 = vmatprep.subr.mxu0 0.0
    %180 = vmatpush1.msra.mxu0 0.0
    %181 = vmatprep.subr.mxu0 0.0
    %182 = vmatpush1.msra.mxu0 0.0
    %183 = vmatprep.subr.mxu0 0.0
    %184 = vmatpush1.msra.mxu0 0.0
    %185 = vmatprep.mubr.f32.mxu0 0.0
    %186 = vmatmul.mubr.f32.gmra.mrb[0].mxu0 %v119
    %v187 = vpop.f32.mrb[0].mxu0
    %v188 = vadd.f32 %v115, %v187
    %v189 = vpop.f32.mrb[0].mxu0
    %190 = vdwg.mxu0
    %v191 = vld [vmem:[%s4] sm:$0x1]
    %v193 = vlaneseq
    %v194 = vshrl.u32 %v193, 7
    %v195 = vsub.s32 0, %v194
    %v196 = vrot.slane %v191, %v195
    %v198 = vadd.f32 %v188, %v196
    %v199 = vtanh.pop %v198
    %v200 = vxor.u32 %v198, 2147483648
    %v201 = vmul.f32 %v200, 1.442695
    %v202 = vpow.pop %v201
    %v203 = vadd.f32 %v202, 1.0
    %v204 = vrcp.pop %v203
    %v205 = vmul.f32 1.0, %v204
    %206 = vrot.lane.b32.xlu0 %v34, 96
    %v207 = vpop.permute.xlu0 %206
    %v209 = vadd.f32 %v198, %v207
    %211 = vrot.lane.b32.xlu0 %v198, 32
    %v212 = vpop.permute.xlu0 %211
    %v214 = vmax.f32 %v209, %v212
    %216 = vrot.lane.b32.xlu0 %v214, 96
    %v217 = vpop.permute.xlu0 %216
    %v219 = vsub.f32 %v198, %v217
    %v220 = vmul.f32 %v219, 1.442695
    %v221 = vpow.pop %v220
    %v222 = vsub.f32 %v209, %v214
    %v223 = vmul.f32 %v222, 1.442695
    %v224 = vpow.pop %v223
    %225 = vrot.lane.b32.xlu0 %v34, 32
    %v226 = vpop.permute.xlu0 %225
    %v228 = vmul.f32 %v224, %v226
    %230 = vrot.lane.b32.xlu0 %v199, 32
    %v231 = vpop.permute.xlu0 %230
    %v233 = vmul.f32 %v221, %v231
    %235 = vrot.lane.b32.xlu0 %v233, 32
    %v236 = vpop.permute.xlu0 %235
    %v238 = vadd.f32 %v228, %v236
    %v239 = vmul.f32 %v224, %v34
    %241 = vrot.lane.b32.xlu0 %v221, 32
    %v242 = vpop.permute.xlu0 %241
    %v244 = vadd.f32 %v239, %v242
    %v245 = vrcp.pop %v244
    %v246 = vmul.f32 %v244, %v245
    %v247 = vsub.f32 2.0, %v246
    %v248 = vmul.f32 %v245, %v247
    %250 = vrot.lane.b32.xlu0 %v238, 32
    %v251 = vpop.permute.xlu0 %250
    %v253 = vmul.f32 %v205, %v251
    %255 = vrot.lane.b32.xlu0 %v248, 32
    %v256 = vpop.permute.xlu0 %255
    %v258 = vmul.f32 %v253, %v256
    %260 = vrot.lane.b32.xlu0 %v258, 32
    %v261 = vpop.permute.xlu0 %260
    %263 = vst.msk [vmem:[%s5] sm:$0xff] %vm44, %v261
    %264 = vrot.lane.b32.xlu0 %v238, 96
    %v265 = vpop.permute.xlu0 %264
    %vm267 = vcmask 523520
    %268 = vst.msk [vmem:[%s5] sm:$0xff] %vm267, %v265
    %vm269 = vcmask 785920
    %270 = vst.msk [vmem:[%s5] sm:$0xff] %vm269, %v244
    %271 = vrot.lane.b32.xlu0 %v214, 32
    %v272 = vpop.permute.xlu0 %271
    %vm274 = vcmask 1048320
    %275 = vst.msk [vmem:[%s5] sm:$0xff] %vm274, %v272
    // Predicated region
    $region26: #{slstm_block.1} parent=1 // pred_check
      _
    $region27: #{slstm_block.1} parent=1 // pred_check_branch
      %277 = sbr.rel (0) target = $region29
    $region28: #{slstm_block.1} parent=1 // pred_region
      _
    $region29: #{slstm_block.1} parent=1 // pred_fallthru
      _
    // Predicated region
    $region30: #{slstm_block.1} parent=1 // pred_check
      _
    $region31: #{slstm_block.1} parent=1 // pred_check_branch
      %279 = sbr.rel (0) target = $region33
    $region32: #{slstm_block.1} parent=1 // pred_region
      _
    $region33: #{slstm_block.1} parent=1 // pred_fallthru
      _
    %280 = vsyncpa [#allocation3], 1

</llo_original>
